<compile_context>
chip_gen: v7x
topology: tpu7x:2x2x1
jax: 0.10.0
libtpu: 0.0.40
codegen_flags: <defaults>
</compile_context>

<pallas_src>
import functools
import numpy as np
import jax
import jax.numpy as jnp
from jax.experimental import pallas as pl
from jax.experimental.pallas import tpu as pltpu

_LN_EPS = 1e-5
_NEG_INF = -1e30                  # finite "masked" value (avoids NaN from -inf)
_ROW_TILE = 512                   # rows of (bs*seq) per grid step for 2-D kernels
_VMEM_LIMIT = 48 * 1024 * 1024    # explicit scoped-VMEM limit (fits v7x 64 MiB)


# ---------------------------------------------------------------------------
# Sinusoid position table (plain numpy glue, identical to the torch helper)
# ---------------------------------------------------------------------------
def get_sinusoid_encoding_table(n_position, d_hid, padding_idx=None):
    def cal_angle(position, hid_idx):
        return position / np.power(10000, 2 * (hid_idx // 2) / d_hid)

    table = np.array(
        [[cal_angle(pos, j) for j in range(d_hid)] for pos in range(n_position)]
    )
    table[:, 0::2] = np.sin(table[:, 0::2])
    table[:, 1::2] = np.cos(table[:, 1::2])
    if padding_idx is not None:
        table[padding_idx] = 0.0
    return jnp.asarray(table, dtype=jnp.float32)


# ---------------------------------------------------------------------------
# Small helpers
# ---------------------------------------------------------------------------
def _row_tile(m):
    # Full array if it fits, else a multiple-of-8 tile (partial last tile is
    # fine: every output row depends only on its own input row).
    return m if m <= _ROW_TILE else _ROW_TILE


def _mosaic_params(n_grid):
    return pltpu.CompilerParams(
        dimension_semantics=("parallel",) * n_grid,
        vmem_limit_bytes=_VMEM_LIMIT,
    )


def _layernorm(y, gamma, beta):
    mu = jnp.mean(y, axis=-1, keepdims=True)
    var = jnp.mean(jnp.square(y - mu), axis=-1, keepdims=True)
    return (y - mu) * jax.lax.rsqrt(var + _LN_EPS) * gamma + beta


# ---------------------------------------------------------------------------
# Pallas kernels
# ---------------------------------------------------------------------------
def _start_kernel(x_ref, w_ref, b_ref, pos_ref, o_ref):
    # start_conv (1x1 conv == linear, weight pre-transposed to (d_feats, d_model))
    # fused with the positional-embedding add.
    h = jnp.dot(x_ref[...].astype(w_ref.dtype), w_ref[...],
                preferred_element_type=jnp.float32)
    o_ref[...] = h + b_ref[...] + pos_ref[...]


def _mha_kernel(x_ref, w_ref, b_ref, o_ref, attn_ref, *,
                n_head, d_k, d_v, inv_temp, causal):
    # One batch element: fused QKV projection + multi-head self-attention.
    x = x_ref[0]                                        # (seq, d_model) f32
    seq = x.shape[0]
    qkv = jnp.dot(x.astype(w_ref.dtype), w_ref[...],
                  preferred_element_type=jnp.float32) + b_ref[...]
    qk_w = n_head * d_k

    if causal:
        row = jax.lax.broadcasted_iota(jnp.int32, (seq, seq), 0)
        col = jax.lax.broadcasted_iota(jnp.int32, (seq, seq), 1)
        future = col > row                              # in-kernel causal mask

    head_outs = []
    for h in range(n_head):                             # n_head is static
        qh = (qkv[:, h * d_k:(h + 1) * d_k] * inv_temp).astype(jnp.bfloat16)
        kh = qkv[:, qk_w + h * d_k: qk_w + (h + 1) * d_k].astype(jnp.bfloat16)
        vh = qkv[:, 2 * qk_w + h * d_v: 2 * qk_w + (h + 1) * d_v]

        # scores = (q / temp) @ k^T  (contraction on last dims, no explicit .T)
        s = jax.lax.dot_general(qh, kh, (((1,), (1,)), ((), ())),
                                preferred_element_type=jnp.float32)
        if causal:
            s = jnp.where(future, _NEG_INF, s)

        mx = jnp.max(s, axis=-1, keepdims=True)
        e = jnp.exp(s - mx)
        denom = jnp.sum(e, axis=-1, keepdims=True)
        p = e * pl.reciprocal(denom, approx=True)       # softmax over keys

        attn_ref[0, h] = p.astype(attn_ref.dtype)
        head_outs.append(
            jnp.dot(p.astype(jnp.bfloat16), vh.astype(jnp.bfloat16),
                    preferred_element_type=jnp.float32))

    # Lane-dense (seq, n_head*d_v) store.
    o_ref[0] = jnp.concatenate(head_outs, axis=-1)


def _proj_ln_kernel(a_ref, w_ref, b_ref, r_ref, g_ref, bb_ref, m_ref, o_ref):
    # fc projection + residual add + LayerNorm + padding-mask, fused.
    h = jnp.dot(a_ref[...].astype(w_ref.dtype), w_ref[...],
                preferred_element_type=jnp.float32) + b_ref[...]
    y = h + r_ref[...]
    o_ref[...] = _layernorm(y, g_ref[...], bb_ref[...]) * m_ref[...]


def _ffn_ln_kernel(x_ref, w1_ref, b1_ref, w2_ref, b2_ref,
                   g_ref, bb_ref, m_ref, o_ref):
    # PositionwiseFeedForward (two 1x1 convs + relu) + residual + LN + mask.
    x = x_ref[...]
    h = jnp.dot(x.astype(w1_ref.dtype), w1_ref[...],
                preferred_element_type=jnp.float32) + b1_ref[...]
    h = jnp.maximum(h, 0.0)
    f = jnp.dot(h.astype(w2_ref.dtype), w2_ref[...],
                preferred_element_type=jnp.float32) + b2_ref[...]
    y = f + x
    o_ref[...] = _layernorm(y, g_ref[...], bb_ref[...]) * m_ref[...]


# ---------------------------------------------------------------------------
# pallas_call wrappers
# ---------------------------------------------------------------------------
def start_embed(x2d, w, b, pos2d):
    m, d_feats = x2d.shape
    d_model = w.shape[1]
    tm = _row_tile(m)
    return pl.pallas_call(
        _start_kernel,
        grid=(pl.cdiv(m, tm),),
        in_specs=[
            pl.BlockSpec((tm, d_feats), lambda i: (i, 0)),
            pl.BlockSpec((d_feats, d_model), lambda i: (0, 0)),
            pl.BlockSpec((1, d_model), lambda i: (0, 0)),
            pl.BlockSpec((tm, d_model), lambda i: (i, 0)),
        ],
        out_specs=pl.BlockSpec((tm, d_model), lambda i: (i, 0)),
        out_shape=jax.ShapeDtypeStruct((m, d_model), jnp.float32),
        compiler_params=_mosaic_params(1),
    )(x2d, w, b, pos2d)


def mha(x_bld, w_qkv, b_qkv, n_head, d_k, d_v, causal,
        attn_probs_dtype=jnp.float32):
    bs, seq, d_model = x_bld.shape
    wide = w_qkv.shape[1]
    inv_temp = float(1.0 / np.power(d_k, 0.5))
    kernel = functools.partial(_mha_kernel, n_head=n_head, d_k=d_k, d_v=d_v,
                               inv_temp=inv_temp, causal=causal)
    return pl.pallas_call(
        kernel,
        grid=(bs,),
        in_specs=[
            pl.BlockSpec((1, seq, d_model), lambda b: (b, 0, 0)),
            pl.BlockSpec((d_model, wide), lambda b: (0, 0)),
            pl.BlockSpec((1, wide), lambda b: (0, 0)),
        ],
        out_specs=[
            pl.BlockSpec((1, seq, n_head * d_v), lambda b: (b, 0, 0)),
            pl.BlockSpec((1, n_head, seq, seq), lambda b: (b, 0, 0, 0)),
        ],
        out_shape=[
            jax.ShapeDtypeStruct((bs, seq, n_head * d_v), jnp.float32),
            jax.ShapeDtypeStruct((bs, n_head, seq, seq), attn_probs_dtype),
        ],
        compiler_params=_mosaic_params(1),
    )(x_bld, w_qkv, b_qkv)


def proj_residual_ln_mask(a2d, w, b, r2d, gamma, beta, mask_col):
    m, d_in = a2d.shape
    d = w.shape[1]
    tm = _row_tile(m)
    return pl.pallas_call(
        _proj_ln_kernel,
        grid=(pl.cdiv(m, tm),),
        in_specs=[
            pl.BlockSpec((tm, d_in), lambda i: (i, 0)),
            pl.BlockSpec((d_in, d), lambda i: (0, 0)),
            pl.BlockSpec((1, d), lambda i: (0, 0)),
            pl.BlockSpec((tm, d), lambda i: (i, 0)),
            pl.BlockSpec((1, d), lambda i: (0, 0)),
            pl.BlockSpec((1, d), lambda i: (0, 0)),
            pl.BlockSpec((tm, 1), lambda i: (i, 0)),
        ],
        out_specs=pl.BlockSpec((tm, d), lambda i: (i, 0)),
        out_shape=jax.ShapeDtypeStruct((m, d), jnp.float32),
        compiler_params=_mosaic_params(1),
    )(a2d, w, b, r2d, gamma, beta, mask_col)


def ffn_residual_ln_mask(x2d, w1, b1, w2, b2, gamma, beta, mask_col):
    m, d = x2d.shape
    h = w1.shape[1]
    tm = _row_tile(m)
    return pl.pallas_call(
        _ffn_ln_kernel,
        grid=(pl.cdiv(m, tm),),
        in_specs=[
            pl.BlockSpec((tm, d), lambda i: (i, 0)),
            pl.BlockSpec((d, h), lambda i: (0, 0)),
            pl.BlockSpec((1, h), lambda i: (0, 0)),
            pl.BlockSpec((h, d), lambda i: (0, 0)),
            pl.BlockSpec((1, d), lambda i: (0, 0)),
            pl.BlockSpec((1, d), lambda i: (0, 0)),
            pl.BlockSpec((1, d), lambda i: (0, 0)),
            pl.BlockSpec((tm, 1), lambda i: (i, 0)),
        ],
        out_specs=pl.BlockSpec((tm, d), lambda i: (i, 0)),
        out_shape=jax.ShapeDtypeStruct((m, d), jnp.float32),
        compiler_params=_mosaic_params(1),
    )(x2d, w1, b1, w2, b2, gamma, beta, mask_col)


# ---------------------------------------------------------------------------
# Parameter preparation: pre-transpose weights to (d_in, d_out), fuse Q/K/V,
# cast matmul weights to bf16 (MXU operands), pre-reshape biases / LN params.
# ---------------------------------------------------------------------------
def prepare_params(params, mxu_dtype=jnp.bfloat16):
    prepped = {
        "start_w": params["start_w"].T.astype(mxu_dtype),      # (d_feats, d_model)
        "start_b": params["start_b"].reshape(1, -1),
        "pos_table": params["pos_table"],
    }
    layers = []
    for lp in params["layers"]:
        w_qkv = jnp.concatenate([lp["wq"].T, lp["wk"].T, lp["wv"].T],
                                axis=1).astype(mxu_dtype)       # (d_model, 3*H*dk)
        b_qkv = jnp.concatenate([lp["bq"], lp["bk"], lp["bv"]]).reshape(1, -1)
        layers.append(dict(
            w_qkv=w_qkv, b_qkv=b_qkv,
            fc_w=lp["fc_w"].T.astype(mxu_dtype),                # (H*dv, d_model)
            fc_b=lp["fc_b"].reshape(1, -1),
            ln1_g=lp["ln1_g"].reshape(1, -1), ln1_b=lp["ln1_b"].reshape(1, -1),
            w1=lp["w1"].T.astype(mxu_dtype), b1=lp["b1"].reshape(1, -1),
            w2=lp["w2"].T.astype(mxu_dtype), b2=lp["b2"].reshape(1, -1),
            ln2_g=lp["ln2_g"].reshape(1, -1), ln2_b=lp["ln2_b"].reshape(1, -1),
        ))
    prepped["layers"] = layers
    return prepped


# ---------------------------------------------------------------------------
# Decoder forward (glue in plain JAX, hot paths in fused Pallas kernels)
# ---------------------------------------------------------------------------
def decoder_forward(prepped, decoder_input, padding_mask, decoder_pos_vec,
                    n_head, d_k, d_v, use_full_attention=False,
                    attn_probs_dtype=jnp.float32):
    bs, d_feats, seq = decoder_input.shape
    padding_mask = padding_mask[:, 0, :]          # squeeze(1) -> (bs, seq)
    pos = decoder_pos_vec[:, 0, :]                # squeeze(1) -> (bs, seq)
    m = bs * seq

    # start_conv (kernel size 1) == linear over channels, fused with pos add.
    x2d = jnp.transpose(decoder_input, (0, 2, 1)).reshape(m, d_feats)
    # TODO(synk): nn.Embedding lookup (frozen sinusoid table) stays as a plain jnp.take gather.
    pos2d = jnp.take(prepped["pos_table"], pos, axis=0).reshape(m, -1)
    dec2d = start_embed(x2d, prepped["start_w"], prepped["start_b"], pos2d)
    d_model = dec2d.shape[-1]

    pad_col = padding_mask.reshape(m, 1).astype(jnp.float32)
    causal = not use_full_attention              # mask generated in-kernel

    attn_list = []
    for lp in prepped["layers"]:
        x_bld = dec2d.reshape(bs, seq, d_model)

        attn_out, attn4 = mha(x_bld, lp["w_qkv"], lp["b_qkv"],
                              n_head, d_k, d_v, causal, attn_probs_dtype)
        # Match torch layout: (n_head*bs, seq, seq), head-major.
        attn_list.append(
            jnp.transpose(attn4, (1, 0, 2, 3)).reshape(n_head * bs, seq, seq))

        a2d = attn_out.reshape(m, n_head * d_v)
        masked = proj_residual_ln_mask(a2d, lp["fc_w"], lp["fc_b"], dec2d,
                                       lp["ln1_g"], lp["ln1_b"], pad_col)
        dec2d = ffn_residual_ln_mask(masked, lp["w1"], lp["b1"],
                                     lp["w2"], lp["b2"],
                                     lp["ln2_g"], lp["ln2_b"], pad_col)

    return dec2d.reshape(bs, seq, d_model), attn_list


# ---------------------------------------------------------------------------
# Deterministic parameter init (shapes follow the torch module __init__)
# ---------------------------------------------------------------------------
def init_params(key, d_feats, d_model, n_layers, n_head, d_k, d_v, max_timesteps):
    keys = jax.random.split(key, 2 + n_layers)
    params = {
        "start_w": jax.random.normal(keys[0], (d_model, d_feats), jnp.float32) * 0.1,
        "start_b": jax.random.normal(keys[1], (d_model,), jnp.float32) * 0.01,
        "pos_table": get_sinusoid_encoding_table(max_timesteps + 1, d_model, padding_idx=0),
    }
    std_qk = float(np.sqrt(2.0 / (d_model + d_k)))
    std_v = float(np.sqrt(2.0 / (d_model + d_v)))
    std_fc = float(np.sqrt(2.0 / (d_model + n_head * d_v)))
    layers = []
    for li in range(n_layers):
        lk = jax.random.split(keys[2 + li], 6)
        layers.append(dict(
            wq=jax.random.normal(lk[0], (n_head * d_k, d_model), jnp.float32) * std_qk,
            bq=jnp.zeros((n_head * d_k,), jnp.float32),
            wk=jax.random.normal(lk[1], (n_head * d_k, d_model), jnp.float32) * std_qk,
            bk=jnp.zeros((n_head * d_k,), jnp.float32),
            wv=jax.random.normal(lk[2], (n_head * d_v, d_model), jnp.float32) * std_v,
            bv=jnp.zeros((n_head * d_v,), jnp.float32),
            fc_w=jax.random.normal(lk[3], (d_model, n_head * d_v), jnp.float32) * std_fc,
            fc_b=jnp.zeros((d_model,), jnp.float32),
            ln1_g=jnp.ones((d_model,), jnp.float32),
            ln1_b=jnp.zeros((d_model,), jnp.float32),
            w1=jax.random.normal(lk[4], (d_model, d_model), jnp.float32) * 0.1,
            b1=jnp.zeros((d_model,), jnp.float32),
            w2=jax.random.normal(lk[5], (d_model, d_model), jnp.float32) * 0.1,
            b2=jnp.zeros((d_model,), jnp.float32),
            ln2_g=jnp.ones((d_model,), jnp.float32),
            ln2_b=jnp.zeros((d_model,), jnp.float32),
        ))
    params["layers"] = layers
    return params


if __name__ == "__main__":
    bs, seq = 2, 8
    d_feats, d_model = 8, 32
    n_layers, n_head, d_k, d_v = 2, 2, 16, 16
    max_timesteps = 16

    key = jax.random.PRNGKey(0)
    k_in, k_par = jax.random.split(key)

    # decoder_input is NCL (batch, d_feats, seq) as expected by nn.Conv1d
    decoder_input = jax.random.normal(k_in, (bs, d_feats, seq), jnp.float32)

    pad_np = np.ones((bs, 1, seq), np.float32)
    pad_np[1, 0, -2:] = 0.0                       # some padded timesteps in batch 1
    padding_mask = jnp.asarray(pad_np)            # (bs, 1, seq)

    decoder_pos_vec = jnp.broadcast_to(
        jnp.arange(1, seq + 1, dtype=jnp.int32), (bs, 1, seq)
    )                                             # (bs, 1, seq), index 0 == padding row

    params = init_params(k_par, d_feats, d_model, n_layers, n_head, d_k, d_v,
                         max_timesteps)
    prepped = prepare_params(params)              # transpose / fuse QKV / bf16 weights

    dec_out, attn_list = decoder_forward(
        prepped, decoder_input, padding_mask, decoder_pos_vec,
        n_head=n_head, d_k=d_k, d_v=d_v, use_full_attention=False,
    )

    jax.block_until_ready(dec_out)
    for a in attn_list:
        jax.block_until_ready(a)

    assert dec_out.shape == (bs, seq, d_model)
    assert all(a.shape == (n_head * bs, seq, seq) for a in attn_list)
    print("KERNEL_OK")
</pallas_src>

<mosaic_0001>
module attributes {stable_mosaic.version = 11 : i64} {
  func.func @_start_kernel(%arg0: i32, %arg1: memref<16x8xf32, #tpu.memory_space<vmem>>, %arg2: memref<8x32xbf16, #tpu.memory_space<vmem>>, %arg3: memref<1x32xf32, #tpu.memory_space<vmem>>, %arg4: memref<16x32xf32, #tpu.memory_space<vmem>>, %arg5: memref<16x32xf32, #tpu.memory_space<vmem>>) attributes {dimension_semantics = [#tpu.dimension_semantics<parallel>], iteration_bounds = array<i64: 1>, scalar_prefetch = 0 : i64, scratch_operands = 0 : i64, tpu.core_type = #tpu.core_type<tc>, window_params = [{transform_indices = @transform_0, window_bounds = array<i64: 16, 8>}, {pipeline_mode = #tpu.pipeline_mode<synchronous>, transform_indices = @transform_1, window_bounds = array<i64: 8, 32>}, {pipeline_mode = #tpu.pipeline_mode<synchronous>, transform_indices = @transform_2, window_bounds = array<i64: 1, 32>}, {transform_indices = @transform_3, window_bounds = array<i64: 16, 32>}, {transform_indices = @transform_4, window_bounds = array<i64: 16, 32>}]} {
    %c0 = arith.constant 0 : index
    %c0_0 = arith.constant 0 : index
    %0 = vector.load %arg1[%c0, %c0_0] : memref<16x8xf32, #tpu.memory_space<vmem>>, vector<16x8xf32>
    %1 = arith.truncf %0 : vector<16x8xf32> to vector<16x8xbf16>
    %c0_1 = arith.constant 0 : index
    %c0_2 = arith.constant 0 : index
    %2 = vector.load %arg2[%c0_1, %c0_2] : memref<8x32xbf16, #tpu.memory_space<vmem>>, vector<8x32xbf16>
    %cst = arith.constant dense<0.000000e+00> : vector<16x32xf32>
    %3 = tpu.matmul %1, %2, %cst {dimension_numbers = #tpu.dot_dimension_numbers<[1], [0], [0], [1], [0, 0, 1, 1], [], []>} : vector<16x8xbf16>, vector<8x32xbf16>, vector<16x32xf32> -> vector<16x32xf32>
    %c0_3 = arith.constant 0 : index
    %c0_4 = arith.constant 0 : index
    %4 = vector.load %arg3[%c0_3, %c0_4] : memref<1x32xf32, #tpu.memory_space<vmem>>, vector<1x32xf32>
    %5 = vector.broadcast %4 : vector<1x32xf32> to vector<16x32xf32>
    %6 = arith.addf %3, %5 : vector<16x32xf32>
    %c0_5 = arith.constant 0 : index
    %c0_6 = arith.constant 0 : index
    %7 = vector.load %arg4[%c0_5, %c0_6] : memref<16x32xf32, #tpu.memory_space<vmem>>, vector<16x32xf32>
    %8 = arith.addf %6, %7 : vector<16x32xf32>
    %c0_7 = arith.constant 0 : index
    %c0_8 = arith.constant 0 : index
    %9 = vector.load %arg5[%c0_7, %c0_8] : memref<16x32xf32, #tpu.memory_space<vmem>>, vector<16x32xf32>
    tpu.vector_store %arg5[%c0_7, %c0_8], %8 {strides = array<i32>} : memref<16x32xf32, #tpu.memory_space<vmem>>, vector<16x32xf32>,
    return
  }
  func.func @transform_0(%arg0: i32) -> (i32, i32) {
    %c0_i32 = arith.constant 0 : i32
    %c0_i32_0 = arith.constant 0 : i32
    return %arg0, %c0_i32 : i32, i32
  }
  func.func @transform_1(%arg0: i32) -> (i32, i32) {
    %c0_i32 = arith.constant 0 : i32
    %c0_i32_0 = arith.constant 0 : i32
    %c0_i32_1 = arith.constant 0 : i32
    return %c0_i32, %c0_i32_0 : i32, i32
  }
  func.func @transform_2(%arg0: i32) -> (i32, i32) {
    %c0_i32 = arith.constant 0 : i32
    %c0_i32_0 = arith.constant 0 : i32
    %c0_i32_1 = arith.constant 0 : i32
    return %c0_i32, %c0_i32_0 : i32, i32
  }
  func.func @transform_3(%arg0: i32) -> (i32, i32) {
    %c0_i32 = arith.constant 0 : i32
    %c0_i32_0 = arith.constant 0 : i32
    return %arg0, %c0_i32 : i32, i32
  }
  func.func @transform_4(%arg0: i32) -> (i32, i32) {
    %c0_i32 = arith.constant 0 : i32
    %c0_i32_0 = arith.constant 0 : i32
    return %arg0, %c0_i32 : i32, i32
  }
}

</mosaic_0001>

<llo_original>
// kernel: tpu_custom_call.1
$region0: #{tpu_custom_call.1}
  #allocation0 [shape = 'u32[]', space=smem, size = 0x4, offset = 0x4, fixed_abs, tag = 'smem constant byte address 0x4 - core index']
  #allocation1 [shape = 'u32[144,128]{1,0:T(1,128)}', space=vmem, size = 0x12000, scoped, tag = 'internal scratch']
  %s0 = inlined_call_operand.vmem [shape: f32[16,8], index: 0, kind: input, shape index: {}]
  %s1 = inlined_call_operand.vmem [shape: bf16[8,32], index: 1, kind: input, shape index: {}]
  %s2 = inlined_call_operand.vmem [shape: f32[1,32], index: 2, kind: input, shape index: {}]
  %s3 = inlined_call_operand.vmem [shape: f32[16,32], index: 3, kind: input, shape index: {}]
  %s4 = inlined_call_operand.hbm [shape: f32[16,32], index: 4, kind: output, shape index: {}]
  %s5 = sld [smem:[#allocation0]]
  $region26: #{tpu_custom_call.1} parent=0
    _
  %s7 = ssub.s32 1, %s5
  %s8 = scalar_select 0, %s7, %s5
  $region1: #{tpu_custom_call.1} parent=0
    #allocation2 [shape = 'u8[8192]{0}', space=vmem, size = 0x2000, scoped, tag = 'output window, operand 0, single buffered']
    #allocation3 [shape = 's32[1]{0}', space=sflag, size = 0x4, scoped, tag = 'scoped memory for tpu_custom_call.1']
    %9 = vsyncpa [#allocation3], 0
    // Predicated region
    $region2: #{tpu_custom_call.1} parent=1 // pred_check
      _
    $region3: #{tpu_custom_call.1} parent=1 // pred_check_branch
      %11 = sbr.rel (0) target = $region5
    $region4: #{tpu_custom_call.1} parent=1 // pred_region
      _
    $region5: #{tpu_custom_call.1} parent=1 // pred_fallthru
      _
    // Predicated region
    $region6: #{tpu_custom_call.1} parent=1 // pred_check
      _
    $region7: #{tpu_custom_call.1} parent=1 // pred_check_branch
      %13 = sbr.rel (0) target = $region9
    $region8: #{tpu_custom_call.1} parent=1 // pred_region
      _
    $region9: #{tpu_custom_call.1} parent=1 // pred_fallthru
      _
    // Predicated region
    $region10: #{tpu_custom_call.1} parent=1 // pred_check
      _
    $region11: #{tpu_custom_call.1} parent=1 // pred_check_branch
      %15 = sbr.rel (0) target = $region13
    $region12: #{tpu_custom_call.1} parent=1 // pred_region
      _
    $region13: #{tpu_custom_call.1} parent=1 // pred_fallthru
      _
    // Predicated region
    $region14: #{tpu_custom_call.1} parent=1 // pred_check
      _
    $region15: #{tpu_custom_call.1} parent=1 // pred_check_branch
      %17 = sbr.rel (0) target = $region17
    $region16: #{tpu_custom_call.1} parent=1 // pred_region
      _
    $region17: #{tpu_custom_call.1} parent=1 // pred_fallthru
      _
    %v19 = vld [vmem:[%s0] sm:$0xff]
    %v20 = vld [vmem:[%s0 + $0x8] sm:$0xff]
    %v21 = vpack.c.bf16 %v20, %v19
    %v22 = vld [vmem:[%s1] sm:$0xf]
    %v23 = vld [vmem:[%s2] sm:$0x1]
    %v25 = vlaneseq
    %v26 = vshrl.u32 %v25, 7
    %v27 = vsub.s32 0, %v26
    %v28 = vrot.slane %v23, %v27
    %vm30 = vcmask 64512
    %v32 = vsel %vm30, %v21, 0
    %vm34 = vcmask 1043456
    %v36 = vsel %vm34, %v22, 0
    %38 = vmatprep.subr.bf16.mxu0 0
    %39 = vmatpush1.bf16.msra.mxu0 %v36
    %40 = vmatprep.subr.bf16.mxu0 0
    %41 = vmatpush1.bf16.msra.mxu0 0
    %42 = vmatprep.subr.bf16.mxu0 0
    %43 = vmatpush1.bf16.msra.mxu0 0
    %44 = vmatprep.subr.bf16.mxu0 0
    %45 = vmatpush1.bf16.msra.mxu0 0
    %46 = vmatprep.subr.bf16.mxu0 0
    %47 = vmatpush1.bf16.msra.mxu0 0
    %48 = vmatprep.subr.bf16.mxu0 0
    %49 = vmatpush1.bf16.msra.mxu0 0
    %50 = vmatprep.subr.bf16.mxu0 0
    %51 = vmatpush1.bf16.msra.mxu0 0
    %52 = vmatprep.subr.bf16.mxu0 0
    %53 = vmatpush1.bf16.msra.mxu0 0
    %54 = vmatprep.subr.bf16.mxu0 0
    %55 = vmatpush1.bf16.msra.mxu0 0
    %56 = vmatprep.subr.bf16.mxu0 0
    %57 = vmatpush1.bf16.msra.mxu0 0
    %58 = vmatprep.subr.bf16.mxu0 0
    %59 = vmatpush1.bf16.msra.mxu0 0
    %60 = vmatprep.subr.bf16.mxu0 0
    %61 = vmatpush1.bf16.msra.mxu0 0
    %62 = vmatprep.subr.bf16.mxu0 0
    %63 = vmatpush1.bf16.msra.mxu0 0
    %64 = vmatprep.subr.bf16.mxu0 0
    %65 = vmatpush1.bf16.msra.mxu0 0
    %66 = vmatprep.subr.bf16.mxu0 0
    %67 = vmatpush1.bf16.msra.mxu0 0
    %68 = vmatprep.subr.bf16.mxu0 0
    %69 = vmatpush1.bf16.msra.mxu0 0
    %70 = vmatprep.mubr.bf16.mxu0 0
    %71 = vmatmul.mubr.bf16.gmra.mrb[0].mxu0 %v32
    %v72 = vpop.f32.mrb[0].mxu0
    %v73 = vadd.f32 %v28, %v72
    %v74 = vpop.f32.mrb[0].mxu0
    %v75 = vpop.f32.mrb[0].mxu0
    %v76 = vadd.f32 %v28, %v75
    %v77 = vpop.f32.mrb[0].mxu0
    %78 = vdwg.mxu0
    %v79 = vld [vmem:[%s3] sm:$0xff]
    %v80 = vld [vmem:[%s3 + $0x8] sm:$0xff]
    %v81 = vadd.f32 %v73, %v79
    %v82 = vadd.f32 %v76, %v80
    %vm83 = vcmask 261120
    %84 = vst.msk [vmem:[#allocation2] sm:$0xff] %vm83, %v81
    %85 = vst.msk [vmem:[#allocation2 + $0x8] sm:$0xff] %vm83, %v82
    // Predicated region
    $region18: #{tpu_custom_call.1} parent=1 // pred_check
      _
    $region19: #{tpu_custom_call.1} parent=1 // pred_check_branch
      %87 = sbr.rel (0) target = $region21
    $region20: #{tpu_custom_call.1} parent=1 // pred_region
      %s89 = ssub.s32 256, 256
      %90 = vsyncadd [#allocation3], %s89
      %s91 = sshll.u32 [#allocation2], 4
      %s92 = int_to_ptr.vmem [resolvable:$true] %s91
      %97 = dma.vmem_to_hbm [thread:$0]  %s92, 256, %s4, [#allocation3], 128, 128, 8
    $region21: #{tpu_custom_call.1} parent=1 // pred_fallthru
      _
    // Predicated region
    $region22: #{tpu_custom_call.1} parent=1 // pred_check
      _
    $region23: #{tpu_custom_call.1} parent=1 // pred_check_branch
      %99 = sbr.rel (0) target = $region25
    $region24: #{tpu_custom_call.1} parent=1 // pred_region
      %100 = dma.done [#allocation3], 256
    $region25: #{tpu_custom_call.1} parent=1 // pred_fallthru
      _
    %101 = vsyncpa [#allocation3], 1

</llo_original>
